<compile_context>
chip_gen: v7x
topology: tpu7x:2x2x1
jax: 0.10.0
libtpu: 0.0.40
codegen_flags: <defaults>
</compile_context>

<pallas_src>
import functools

import jax
import jax.numpy as jnp
from jax.experimental import pallas as pl
from jax.experimental.pallas import tpu as pltpu

_LANE = 128
_SUBLANE = 8


def _round_up(x: int, m: int) -> int:
    return (x + m - 1) // m * m


def _tpu_generation() -> int:
    """Best-effort TPU generation sniff for tile sizing (falls back to v6e)."""
    try:
        kind = jax.devices()[0].device_kind.lower()
    except Exception:  # pragma: no cover - defensive
        kind = ""
    if any(tag in kind for tag in ("v7", "7x")):
        return 7
    if "v5" in kind:
        return 5
    return 6


def _classifier_kernel(x_ref, w_ref, b_ref, o_ref):
    # x_ref: (TILE_M, H_pad) bf16   w_ref: (H_pad, 128) bf16
    # b_ref: (1, 128) f32           o_ref: (TILE_M, 128) f32
    logits = jnp.dot(x_ref[...], w_ref[...], preferred_element_type=jnp.float32)
    o_ref[...] = logits + b_ref[...]          # bias add / epilogue in f32 (v5e VPU has no bf16)


def prepare_classifier_params(weight: jax.Array, bias: jax.Array):
    """One-time parameter re-layout (hoisted out of the per-call path).

    weight: [n_cls, H] (PyTorch nn.Linear layout), bias: [n_cls].
    Returns w_pad: [H_pad, 128] bf16 (transposed, zero-padded, lane-dense) and
            b_pad: [1, 128] f32.
    Zero padding keeps the valid logits exact.
    """
    n_cls, H = weight.shape
    H_pad = _round_up(H, _LANE)
    w_pad = jnp.zeros((H_pad, _LANE), jnp.float32).at[:H, :n_cls].set(weight.T)
    b_pad = jnp.zeros((1, _LANE), jnp.float32).at[0, :n_cls].set(bias)
    return w_pad.astype(jnp.bfloat16), b_pad


def classification_head(features: jax.Array, w_pad: jax.Array, b_pad: jax.Array,
                        n_cls: int = 2) -> jax.Array:
    """features: [B, H] f32 sentence embeddings -> logits [B, n_cls] f32."""
    B, H = features.shape
    H_pad, N_pad = w_pad.shape

    # Generation-aware batch tiling: v7x has 64 MiB VMEM (vs 128 MiB v5e/v6e),
    # so halve the tile there; also cap by the (sublane-rounded) batch.
    gen = _tpu_generation()
    tile_m_target = 512 if gen == 7 else 1024
    B_pad = _round_up(max(B, _SUBLANE), _SUBLANE)
    tile_m = min(tile_m_target, B_pad)
    B_pad = _round_up(B_pad, tile_m)
    vmem_limit = (32 << 20) if gen == 7 else (64 << 20)

    # Stream features in bf16 (halves the dominant HBM read); pad batch/hidden
    # so every block is (8,128)-aligned and lane-dense.
    x = features.astype(jnp.bfloat16)
    if B_pad != B or H_pad != H:
        x = jnp.pad(x, ((0, B_pad - B), (0, H_pad - H)))

    out = pl.pallas_call(
        _classifier_kernel,
        out_shape=jax.ShapeDtypeStruct((B_pad, N_pad), jnp.float32),
        grid_spec=pltpu.PrefetchScalarGridSpec(
            num_scalar_prefetch=0,
            grid=(B_pad // tile_m,),
            in_specs=[
                pl.BlockSpec((tile_m, H_pad), lambda i: (i, 0)),   # pipelined feature stream
                pl.BlockSpec((H_pad, N_pad), lambda i: (0, 0)),    # weight stays resident
                pl.BlockSpec((1, N_pad), lambda i: (0, 0)),        # bias stays resident
            ],
            out_specs=pl.BlockSpec((tile_m, N_pad), lambda i: (i, 0)),
        ),
        compiler_params=pltpu.CompilerParams(
            dimension_semantics=("parallel",),   # shard B-tiles across v7x's 2 TCs
            vmem_limit_bytes=vmem_limit,
        ),
    )(x, w_pad, b_pad)

    return out[:B, :n_cls]


if __name__ == "__main__":
    # Small shapes consistent with the forward pass:
    # batch of 4 "sentences", sentence-embedding dimension 32, 2 classes.
    B, H, NUM_CLASSES = 4, 32, 2

    key = jax.random.PRNGKey(0)
    k_feat, k_w, k_b = jax.random.split(key, 3)

    # TODO(synk): the sentence encoder `self.model.encode(input_sentences)` is an
    # external pretrained transformer invoked on raw strings; its output
    # embeddings are synthesized here as the kernel's input.
    features = jax.random.normal(k_feat, (B, H), dtype=jnp.float32)

    # Deterministic nn.Linear(H, 2)-style init (uniform in +-1/sqrt(H)).
    bound = 1.0 / jnp.sqrt(jnp.float32(H))
    weight = jax.random.uniform(k_w, (NUM_CLASSES, H), minval=-bound, maxval=bound,
                                dtype=jnp.float32)
    bias = jax.random.uniform(k_b, (NUM_CLASSES,), minval=-bound, maxval=bound,
                              dtype=jnp.float32)

    # Parameter layout prepared ONCE (transpose + zero-pad to lane-dense), not per call.
    w_pad, b_pad = prepare_classifier_params(weight, bias)

    head = jax.jit(functools.partial(classification_head, n_cls=NUM_CLASSES))
    logits = head(features, w_pad, b_pad)
    logits = jax.block_until_ready(logits)

    # Reference check against plain JAX (f32).  bf16 feature/weight stream with
    # f32 accumulation -> ~1e-2 relative error expected, so loosened tolerance.
    ref = features @ weight.T + bias
    assert logits.shape == (B, NUM_CLASSES)
    assert jnp.allclose(logits, ref, atol=2e-2, rtol=2e-2)

    print("KERNEL_OK")
</pallas_src>

<mosaic_0001>
module attributes {stable_mosaic.version = 11 : i64} {
  func.func @_classifier_kernel(%arg0: i32, %arg1: memref<8x128xbf16, #tpu.memory_space<vmem>>, %arg2: memref<128x128xbf16, #tpu.memory_space<vmem>>, %arg3: memref<1x128xf32, #tpu.memory_space<vmem>>, %arg4: memref<8x128xf32, #tpu.memory_space<vmem>>) attributes {dimension_semantics = [#tpu.dimension_semantics<parallel>], iteration_bounds = array<i64: 1>, scalar_prefetch = 0 : i64, scratch_operands = 0 : i64, tpu.core_type = #tpu.core_type<tc>, window_params = [{transform_indices = @transform_0, window_bounds = array<i64: 8, 128>}, {pipeline_mode = #tpu.pipeline_mode<synchronous>, transform_indices = @transform_1, window_bounds = array<i64: 128, 128>}, {pipeline_mode = #tpu.pipeline_mode<synchronous>, transform_indices = @transform_2, window_bounds = array<i64: 1, 128>}, {transform_indices = @transform_3, window_bounds = array<i64: 8, 128>}]} {
    %c0 = arith.constant 0 : index
    %c0_0 = arith.constant 0 : index
    %0 = vector.load %arg1[%c0, %c0_0] : memref<8x128xbf16, #tpu.memory_space<vmem>>, vector<8x128xbf16>
    %c0_1 = arith.constant 0 : index
    %c0_2 = arith.constant 0 : index
    %1 = vector.load %arg2[%c0_1, %c0_2] : memref<128x128xbf16, #tpu.memory_space<vmem>>, vector<128x128xbf16>
    %cst = arith.constant dense<0.000000e+00> : vector<8x128xf32>
    %2 = tpu.matmul %0, %1, %cst {dimension_numbers = #tpu.dot_dimension_numbers<[1], [0], [0], [1], [0, 0, 1, 1], [], []>} : vector<8x128xbf16>, vector<128x128xbf16>, vector<8x128xf32> -> vector<8x128xf32>
    %c0_3 = arith.constant 0 : index
    %c0_4 = arith.constant 0 : index
    %3 = vector.load %arg3[%c0_3, %c0_4] : memref<1x128xf32, #tpu.memory_space<vmem>>, vector<1x128xf32>
    %4 = vector.broadcast %3 : vector<1x128xf32> to vector<8x128xf32>
    %5 = arith.addf %2, %4 : vector<8x128xf32>
    %c0_5 = arith.constant 0 : index
    %c0_6 = arith.constant 0 : index
    %6 = vector.load %arg4[%c0_5, %c0_6] : memref<8x128xf32, #tpu.memory_space<vmem>>, vector<8x128xf32>
    tpu.vector_store %arg4[%c0_5, %c0_6], %5 {strides = array<i32>} : memref<8x128xf32, #tpu.memory_space<vmem>>, vector<8x128xf32>,
    return
  }
  func.func @transform_0(%arg0: i32) -> (i32, i32) {
    %c0_i32 = arith.constant 0 : i32
    %c0_i32_0 = arith.constant 0 : i32
    return %arg0, %c0_i32 : i32, i32
  }
  func.func @transform_1(%arg0: i32) -> (i32, i32) {
    %c0_i32 = arith.constant 0 : i32
    %c0_i32_0 = arith.constant 0 : i32
    %c0_i32_1 = arith.constant 0 : i32
    return %c0_i32, %c0_i32_0 : i32, i32
  }
  func.func @transform_2(%arg0: i32) -> (i32, i32) {
    %c0_i32 = arith.constant 0 : i32
    %c0_i32_0 = arith.constant 0 : i32
    %c0_i32_1 = arith.constant 0 : i32
    return %c0_i32, %c0_i32_0 : i32, i32
  }
  func.func @transform_3(%arg0: i32) -> (i32, i32) {
    %c0_i32 = arith.constant 0 : i32
    %c0_i32_0 = arith.constant 0 : i32
    return %arg0, %c0_i32 : i32, i32
  }
}

</mosaic_0001>

<llo_original>
// kernel: classification_head.1
$region0: #{classification_head.1}
  #allocation0 [shape = 'u32[]', space=smem, size = 0x4, offset = 0x4, fixed_abs, tag = 'smem constant byte address 0x4 - core index']
  #allocation1 [shape = 'u32[144,128]{1,0:T(1,128)}', space=vmem, size = 0x12000, scoped, tag = 'internal scratch']
  %s0 = inlined_call_operand.hbm [shape: bf16[8,128], index: 0, kind: input, shape index: {}]
  %s1 = inlined_call_operand.hbm [shape: bf16[128,128], index: 1, kind: input, shape index: {}]
  %s2 = inlined_call_operand.hbm [shape: f32[1,128], index: 2, kind: input, shape index: {}]
  %s3 = inlined_call_operand.hbm [shape: f32[8,128], index: 3, kind: output, shape index: {}]
  %s4 = sld [smem:[#allocation0]]
  $region34: #{classification_head.1} parent=0
    _
  %s6 = ssub.s32 1, %s4
  %s7 = scalar_select 0, %s6, %s4
  $region1: #{classification_head.1} parent=0
    #allocation2 [shape = 'u8[2048]{0}', space=vmem, size = 0x800, scoped, tag = 'input window, operand 0, single buffered']
    #allocation3 [shape = 's32[1]{0}', space=sflag, size = 0x4, scoped, tag = 'scoped memory for classification_head.1']
    #allocation4 [shape = 's32[1]{0}', space=sflag, size = 0x4, scoped, tag = 'scoped memory for classification_head.1']
    #allocation5 [shape = 'u8[32768]{0}', space=vmem, size = 0x8000, scoped, tag = 'input window, operand 1, single buffered']
    #allocation6 [shape = 's32[1]{0}', space=sflag, size = 0x4, scoped, tag = 'scoped memory for classification_head.1']
    #allocation7 [shape = 'u8[512]{0}', space=vmem, size = 0x400, scoped, tag = 'input window, operand 2, single buffered']
    #allocation8 [shape = 'u8[4096]{0}', space=vmem, size = 0x1000, scoped, tag = 'output window, operand 0, single buffered']
    %8 = vsyncpa [#allocation3], 0
    %9 = vsyncpa [#allocation6], 0
    %10 = vsyncpa [#allocation4], 0
    // Predicated region
    $region2: #{classification_head.1} parent=1 // pred_check
      _
    $region3: #{classification_head.1} parent=1 // pred_check_branch
      %12 = sbr.rel (0) target = $region5
    $region4: #{classification_head.1} parent=1 // pred_region
      %s14 = ssub.s32 64, 64
      %15 = vsyncadd [#allocation3], %s14
      %s17 = sshll.u32 [#allocation2], 4
      %s18 = int_to_ptr.vmem [resolvable:$true] %s17
      %20 = dma.hbm_to_vmem [thread:$0]  %s0, 64, %s18, [#allocation3]
    $region5: #{classification_head.1} parent=1 // pred_fallthru
      _
    // Predicated region
    $region6: #{classification_head.1} parent=1 // pred_check
      _
    $region7: #{classification_head.1} parent=1 // pred_check_branch
      %22 = sbr.rel (0) target = $region9
    $region8: #{classification_head.1} parent=1 // pred_region
      %s24 = ssub.s32 1024, 1024
      %25 = vsyncadd [#allocation6], %s24
      %s26 = sshll.u32 [#allocation5], 4
      %s27 = int_to_ptr.vmem [resolvable:$true] %s26
      %32 = dma.hbm_to_vmem [thread:$0]  %s1, 1024, %s27, [#allocation6], 64, 64, 4
    $region9: #{classification_head.1} parent=1 // pred_fallthru
      _
    // Predicated region
    $region10: #{classification_head.1} parent=1 // pred_check
      _
    $region11: #{classification_head.1} parent=1 // pred_check_branch
      %34 = sbr.rel (0) target = $region13
    $region12: #{classification_head.1} parent=1 // pred_region
      %s36 = ssub.s32 16, 16
      %37 = vsyncadd [#allocation6], %s36
      %s39 = sshll.u32 [#allocation7], 4
      %s40 = int_to_ptr.vmem [resolvable:$true] %s39
      %42 = dma.hbm_to_vmem [thread:$0]  %s2, 16, %s40, [#allocation6]
    $region13: #{classification_head.1} parent=1 // pred_fallthru
      _
    // Predicated region
    $region14: #{classification_head.1} parent=1 // pred_check
      _
    $region15: #{classification_head.1} parent=1 // pred_check_branch
      %44 = sbr.rel (0) target = $region17
    $region16: #{classification_head.1} parent=1 // pred_region
      %45 = dma.done [#allocation3], 64
    $region17: #{classification_head.1} parent=1 // pred_fallthru
      _
    // Predicated region
    $region18: #{classification_head.1} parent=1 // pred_check
      _
    $region19: #{classification_head.1} parent=1 // pred_check_branch
      %47 = sbr.rel (0) target = $region21
    $region20: #{classification_head.1} parent=1 // pred_region
      %48 = dma.done [#allocation6], 1024
    $region21: #{classification_head.1} parent=1 // pred_fallthru
      _
    // Predicated region
    $region22: #{classification_head.1} parent=1 // pred_check
      _
    $region23: #{classification_head.1} parent=1 // pred_check_branch
      %50 = sbr.rel (0) target = $region25
    $region24: #{classification_head.1} parent=1 // pred_region
      %51 = dma.done [#allocation6], 16
    $region25: #{classification_head.1} parent=1 // pred_fallthru
      _
    %v53 = vld [vmem:[#allocation2] sm:$0xf]
    %v54 = vld [vmem:[#allocation5] sm:$0xf]
    %v55 = vld [vmem:[#allocation5 + $0x4] sm:$0xf]
    %v56 = vld [vmem:[#allocation5 + $0x8] sm:$0xf]
    %v57 = vld [vmem:[#allocation5 + $0xc] sm:$0xf]
    %v58 = vld [vmem:[#allocation5 + $0x10] sm:$0xf]
    %v59 = vld [vmem:[#allocation5 + $0x14] sm:$0xf]
    %v60 = vld [vmem:[#allocation5 + $0x18] sm:$0xf]
    %v61 = vld [vmem:[#allocation5 + $0x1c] sm:$0xf]
    %v62 = vld [vmem:[#allocation5 + $0x20] sm:$0xf]
    %v63 = vld [vmem:[#allocation5 + $0x24] sm:$0xf]
    %v64 = vld [vmem:[#allocation5 + $0x28] sm:$0xf]
    %v65 = vld [vmem:[#allocation5 + $0x2c] sm:$0xf]
    %v66 = vld [vmem:[#allocation5 + $0x30] sm:$0xf]
    %v67 = vld [vmem:[#allocation5 + $0x34] sm:$0xf]
    %v68 = vld [vmem:[#allocation5 + $0x38] sm:$0xf]
    %v69 = vld [vmem:[#allocation5 + $0x3c] sm:$0xf]
    %v70 = vld [vmem:[#allocation7] sm:$0x1]
    %v72 = vlaneseq
    %v73 = vshrl.u32 %v72, 7
    %v74 = vsub.s32 0, %v73
    %v75 = vrot.slane %v70, %v74
    %v93 = vunpack.c.l.b16 %v54
    %v94 = vunpack.c.l.b16 %v55
    %v95 = vunpack.c.l.b16 %v56
    %v96 = vunpack.c.l.b16 %v57
    %v97 = vunpack.c.l.b16 %v58
    %v98 = vunpack.c.l.b16 %v59
    %v99 = vunpack.c.l.b16 %v60
    %v100 = vunpack.c.l.b16 %v61
    %v101 = vunpack.c.l.b16 %v62
    %v102 = vunpack.c.l.b16 %v63
    %v103 = vunpack.c.l.b16 %v64
    %v104 = vunpack.c.l.b16 %v65
    %v105 = vunpack.c.l.b16 %v66
    %v106 = vunpack.c.l.b16 %v67
    %v107 = vunpack.c.l.b16 %v68
    %v108 = vunpack.c.l.b16 %v69
    %v109 = vpack.c.b16 %v94, %v93
    %v110 = vpack.c.b16 %v96, %v95
    %v111 = vpack.c.b16 %v98, %v97
    %v112 = vpack.c.b16 %v100, %v99
    %v113 = vpack.c.b16 %v102, %v101
    %v114 = vpack.c.b16 %v104, %v103
    %v115 = vpack.c.b16 %v106, %v105
    %v116 = vpack.c.b16 %v108, %v107
    %125 = vmatprep.subr.bf16.mxu0 0
    %126 = vmatpush1.bf16.msra.mxu0 %v109
    %127 = vmatprep.subr.bf16.mxu0 0
    %128 = vmatpush1.bf16.msra.mxu0 %v110
    %129 = vmatprep.subr.bf16.mxu0 0
    %130 = vmatpush1.bf16.msra.mxu0 %v111
    %131 = vmatprep.subr.bf16.mxu0 0
    %132 = vmatpush1.bf16.msra.mxu0 %v112
    %133 = vmatprep.subr.bf16.mxu0 0
    %134 = vmatpush1.bf16.msra.mxu0 %v113
    %135 = vmatprep.subr.bf16.mxu0 0
    %136 = vmatpush1.bf16.msra.mxu0 %v114
    %137 = vmatprep.subr.bf16.mxu0 0
    %138 = vmatpush1.bf16.msra.mxu0 %v115
    %139 = vmatprep.subr.bf16.mxu0 0
    %140 = vmatpush1.bf16.msra.mxu0 %v116
    %141 = vmatprep.subr.bf16.mxu0 0
    %142 = vmatpush1.bf16.msra.mxu0 0
    %143 = vmatprep.subr.bf16.mxu0 0
    %144 = vmatpush1.bf16.msra.mxu0 0
    %145 = vmatprep.subr.bf16.mxu0 0
    %146 = vmatpush1.bf16.msra.mxu0 0
    %147 = vmatprep.subr.bf16.mxu0 0
    %148 = vmatpush1.bf16.msra.mxu0 0
    %149 = vmatprep.subr.bf16.mxu0 0
    %150 = vmatpush1.bf16.msra.mxu0 0
    %151 = vmatprep.subr.bf16.mxu0 0
    %152 = vmatpush1.bf16.msra.mxu0 0
    %153 = vmatprep.subr.bf16.mxu0 0
    %154 = vmatpush1.bf16.msra.mxu0 0
    %155 = vmatprep.subr.bf16.mxu0 0
    %156 = vmatpush1.bf16.msra.mxu0 0
    %157 = vmatprep.mubr.bf16.mxu0 0
    %158 = vmatmul.mubr.bf16.gmra.mrb[0].mxu0 %v53
    %v159 = vpop.f32.mrb[0].mxu0
    %v160 = vadd.f32 %v75, %v159
    %v161 = vpop.f32.mrb[0].mxu0
    %v162 = vpop.f32.mrb[0].mxu0
    %v163 = vpop.f32.mrb[0].mxu0
    %164 = vdwg.mxu0
    %165 = vst [vmem:[#allocation8] sm:$0xff] %v160
    // Predicated region
    $region26: #{classification_head.1} parent=1 // pred_check
      _
    $region27: #{classification_head.1} parent=1 // pred_check_branch
      %167 = sbr.rel (0) target = $region29
    $region28: #{classification_head.1} parent=1 // pred_region
      %s169 = ssub.s32 128, 128
      %170 = vsyncadd [#allocation4], %s169
      %s172 = sshll.u32 [#allocation8], 4
      %s173 = int_to_ptr.vmem [resolvable:$true] %s172
      %175 = dma.vmem_to_hbm [thread:$0]  %s173, 128, %s3, [#allocation4]
    $region29: #{classification_head.1} parent=1 // pred_fallthru
      _
    // Predicated region
    $region30: #{classification_head.1} parent=1 // pred_check
      _
    $region31: #{classification_head.1} parent=1 // pred_check_branch
      %177 = sbr.rel (0) target = $region33
    $region32: #{classification_head.1} parent=1 // pred_region
      %178 = dma.done [#allocation4], 128
    $region33: #{classification_head.1} parent=1 // pred_fallthru
      _
    %179 = vsyncpa [#allocation3], 1
    %180 = vsyncpa [#allocation6], 1
    %181 = vsyncpa [#allocation4], 1

</llo_original>
